<compile_context>
chip_gen: v5e
topology: v5e:2x2
jax: 0.10.0
libtpu: 0.0.40
codegen_flags: <defaults>
</compile_context>

<pallas_src>
import functools

import jax
import jax.numpy as jnp
from jax.experimental import pallas as pl
from jax.experimental.pallas import tpu as pltpu


# ---------------------------------------------------------------------------
# Fused ConvBlock kernel: one grid step == one (pooled) batch image.
# im2col, both convs, BN and LeakyReLU stay VMEM-resident (no HBM round trip).
# ---------------------------------------------------------------------------
def _downblock_kernel(x_ref, w1_ref, b1_ref, w2_ref, b2_ref, em_ref,
                      o_ref, xpad, h1pad, col1, col2, *, wo, slope):
    # x_ref:  (Cin, M)          pooled image, C-major, M = Ho*Wo (f32)
    # w*_ref: (Cout, 9*C)       densely packed conv weights * BN scale (bf16)
    # b*_ref: (Cout, 1)         conv bias folded with BN shift (f32)
    # em_ref: (2, M)            column-edge masks (bf16): row0 j>0, row1 j<Wo-1
    # o_ref:  (Cout, M)         output image, C-major (f32)
    # xpad:   (Cin,  M+2*(wo+1))  flat zero-halo'd pooled image (bf16)
    # h1pad:  (Cout, M+2*(wo+1))  flat zero-halo'd conv1 activation (bf16)
    # col1:   (9*Cin,  M)       dense im2col for conv1 (bf16)
    # col2:   (9*Cout, M)       dense im2col for conv2 (bf16)
    m = o_ref.shape[1]
    pad = wo + 1

    lmask = em_ref[0:1, :]          # valid positions for dj = -1 taps
    rmask = em_ref[1:2, :]          # valid positions for dj = +1 taps

    def im2col(src, src_pad, col_scr):
        """Store src into the flat halo buffer and build the dense tap matrix."""
        c = src_pad.shape[0]
        zeros_strip = jnp.zeros((c, pad), jnp.bfloat16)
        src_pad[:, 0:pad] = zeros_strip          # top halo row (+ left corner)
        src_pad[:, pad + m:] = zeros_strip       # bottom halo row (+ right corner)
        src_pad[:, pad:pad + m] = src            # interior, rewritten every step
        # Tap (di, dj) of output pixel m = i*Wo + j sits at flat padded index
        # m + (di+1)*Wo + dj + 1; row over/underflow lands in the zero strips,
        # column wrap-around is killed by the edge masks.
        for di in (-1, 0, 1):
            for dj in (-1, 0, 1):
                t = (di + 1) * 3 + (dj + 1)
                start = (di + 1) * wo + dj + 1
                tap = src_pad[:, start:start + m]
                if dj == -1:
                    tap = tap * lmask
                elif dj == 1:
                    tap = tap * rmask
                col_scr[t * c:(t + 1) * c, :] = tap

    # ---- conv1 (BN scale folded into weights) + bias + LeakyReLU -----------
    im2col(x_ref[...].astype(jnp.bfloat16), xpad, col1)
    y = jnp.dot(w1_ref[...], col1[...], preferred_element_type=jnp.float32)
    y = y + b1_ref[...]
    y = jnp.where(y >= 0.0, y, slope * y)

    # TODO(synk): Dropout(dropout_p) is identity (eval mode); training-mode
    # dropout and batch-statistics BatchNorm are not implemented in-kernel.

    # ---- conv2 over the VMEM-resident intermediate (no HBM round trip) -----
    im2col(y.astype(jnp.bfloat16), h1pad, col2)
    y = jnp.dot(w2_ref[...], col2[...], preferred_element_type=jnp.float32)
    y = y + b2_ref[...]
    y = jnp.where(y >= 0.0, y, slope * y)

    o_ref[...] = y.astype(o_ref.dtype)           # NCHW-native (Cout, M) block


# ---------------------------------------------------------------------------
# Wrapper-side weight / BN packing (tiny arrays, folded once per call in XLA)
# ---------------------------------------------------------------------------
def _fold_bn(conv_b, bn, eps):
    scale = bn["gamma"] / jnp.sqrt(bn["var"] + eps)
    bias = (conv_b - bn["mean"]) * scale + bn["beta"]
    return scale, bias.reshape(-1, 1).astype(jnp.float32)


def _pack_conv_weights(w, bn_scale):
    # PyTorch (Cout, Cin, 3, 3) -> (Cout, 9*Cin); K index = (ky*3+kx)*Cin + c.
    # Dense packing (no per-tap lane padding); BN scale folded per out-channel.
    cout, cin = w.shape[0], w.shape[1]
    wt = jnp.transpose(w, (0, 2, 3, 1)).reshape(cout, 9 * cin)
    return (wt * bn_scale[:, None]).astype(jnp.bfloat16)


# ---------------------------------------------------------------------------
# Public forward (NCHW in / NCHW out, PyTorch convention)
# ---------------------------------------------------------------------------
def down_block_forward(params, x_nchw, dropout_p=0.0, slope=0.01, eps=1e-5):
    del dropout_p  # eval-mode Dropout == identity (see TODO in kernel)
    N, Cin, H, W = x_nchw.shape
    Cout = params["w1"].shape[0]
    Ho, Wo = H // 2, W // 2
    M = Ho * Wo
    Mp = M + 2 * (Wo + 1)

    # TODO(synk): row-block the spatial grid (overlapping-halo blocks) so the
    # per-image col matrices fit VMEM for large images; whole pooled image per
    # grid step is assumed here.
    # MaxPool2d(2) (floor-crops odd dims like PyTorch) runs as a tiny fused XLA
    # reduce ahead of the kernel.
    # TODO(synk): fuse the 2x2 max-pool into the kernel once a lane-strided
    # (stride-2 minor-dim) read path is available; pooling W in-kernel from
    # NCHW otherwise forces a minor-dim relayout.
    xp = x_nchw[:, :, :2 * Ho, :2 * Wo].astype(jnp.float32)
    xp = xp.reshape(N, Cin, Ho, 2, Wo, 2).max(axis=(3, 5))
    xp = xp.reshape(N, Cin, M)                       # free (row-major) reshape

    s1, b1 = _fold_bn(params["b1"], params["bn1"], eps)
    s2, b2 = _fold_bn(params["b2"], params["bn2"], eps)
    w1p = _pack_conv_weights(params["w1"], s1)       # (Cout, 9*Cin)  bf16
    w2p = _pack_conv_weights(params["w2"], s2)       # (Cout, 9*Cout) bf16

    j = jnp.arange(M, dtype=jnp.int32) % Wo
    edge_mask = jnp.stack([(j > 0), (j < Wo - 1)]).astype(jnp.bfloat16)  # (2, M)

    kernel = functools.partial(_downblock_kernel, wo=Wo, slope=slope)

    # Per-generation VMEM budget (~48 MiB on v7x, ~96 MiB on v5e/v6e).
    try:
        vmem_cap = pltpu.get_tpu_info().vmem_capacity_bytes
    except Exception:
        vmem_cap = 64 * 1024 * 1024
    vmem_limit = int(min(0.75 * vmem_cap, 96 * 1024 * 1024))

    out = pl.pallas_call(
        kernel,
        out_shape=jax.ShapeDtypeStruct((N, Cout, M), jnp.float32),
        grid=(N,),
        in_specs=[
            pl.BlockSpec((None, Cin, M), lambda b: (b, 0, 0)),
            pl.BlockSpec((Cout, 9 * Cin), lambda b: (0, 0)),
            pl.BlockSpec((Cout, 1), lambda b: (0, 0)),
            pl.BlockSpec((Cout, 9 * Cout), lambda b: (0, 0)),
            pl.BlockSpec((Cout, 1), lambda b: (0, 0)),
            pl.BlockSpec((2, M), lambda b: (0, 0)),
        ],
        out_specs=pl.BlockSpec((None, Cout, M), lambda b: (b, 0, 0)),
        scratch_shapes=[
            pltpu.VMEM((Cin, Mp), jnp.bfloat16),      # flat halo'd pooled image
            pltpu.VMEM((Cout, Mp), jnp.bfloat16),     # flat halo'd conv1 act.
            pltpu.VMEM((9 * Cin, M), jnp.bfloat16),   # dense im2col, conv1
            pltpu.VMEM((9 * Cout, M), jnp.bfloat16),  # dense im2col, conv2
        ],
        compiler_params=pltpu.CompilerParams(
            dimension_semantics=("parallel",),
            vmem_limit_bytes=vmem_limit,
        ),
    )(xp, w1p, b1, w2p, b2, edge_mask)

    return out.reshape(N, Cout, Ho, Wo)              # NCHW, free reshape


# ---------------------------------------------------------------------------
# Deterministic parameter init (PyTorch-like shapes / ranges)
# ---------------------------------------------------------------------------
def init_down_block_params(key, in_channels, out_channels):
    k1, k2, k3, k4 = jax.random.split(key, 4)

    def conv_init(kw, kb, cin, cout):
        fan_in = cin * 9
        bound = 1.0 / jnp.sqrt(jnp.float32(fan_in))
        w = jax.random.uniform(kw, (cout, cin, 3, 3), jnp.float32, -bound, bound)
        b = jax.random.uniform(kb, (cout,), jnp.float32, -bound, bound)
        return w, b

    def bn_init(c):
        return dict(gamma=jnp.ones((c,), jnp.float32),
                    beta=jnp.zeros((c,), jnp.float32),
                    mean=jnp.zeros((c,), jnp.float32),
                    var=jnp.ones((c,), jnp.float32))

    w1, b1 = conv_init(k1, k2, in_channels, out_channels)
    w2, b2 = conv_init(k3, k4, out_channels, out_channels)
    return dict(w1=w1, b1=b1, bn1=bn_init(out_channels),
                w2=w2, b2=b2, bn2=bn_init(out_channels))


# ---------------------------------------------------------------------------
# Pure-JAX reference (HIGHEST-precision) for a correctness cross-check
# ---------------------------------------------------------------------------
def _reference_downblock(params, x_nchw, eps=1e-5, slope=0.01):
    N, C, H, W = x_nchw.shape
    Ho, Wo = H // 2, W // 2
    x = x_nchw[:, :, :2 * Ho, :2 * Wo]
    x = x.reshape(N, C, Ho, 2, Wo, 2).max(axis=(3, 5))

    def conv_bn(x, w, b, bn):
        y = jax.lax.conv_general_dilated(
            x, w, (1, 1), "SAME",
            dimension_numbers=("NCHW", "OIHW", "NCHW"),
            precision=jax.lax.Precision.HIGHEST)
        s = (bn["gamma"] / jnp.sqrt(bn["var"] + eps))[None, :, None, None]
        y = (y + b[None, :, None, None] - bn["mean"][None, :, None, None]) * s \
            + bn["beta"][None, :, None, None]
        return jnp.where(y >= 0, y, slope * y)

    x = conv_bn(x, params["w1"], params["b1"], params["bn1"])
    x = conv_bn(x, params["w2"], params["b2"], params["bn2"])
    return x


if __name__ == "__main__":
    key = jax.random.PRNGKey(0)
    kx, kp = jax.random.split(key)

    in_channels, out_channels, dropout_p = 4, 8, 0.1
    x = jax.random.normal(kx, (2, in_channels, 16, 16), jnp.float32)  # NCHW

    params = init_down_block_params(kp, in_channels, out_channels)

    fwd = jax.jit(functools.partial(down_block_forward, dropout_p=dropout_p))
    y = fwd(params, x)
    jax.block_until_ready(y)

    assert y.shape == (2, out_channels, 8, 8), y.shape
    assert bool(jnp.isfinite(y).all())

    # bf16 matmul operands -> bf16-class accuracy vs. the HIGHEST-precision ref.
    y_ref = _reference_downblock(params, x)
    max_err = float(jnp.max(jnp.abs(y - y_ref)))
    mean_err = float(jnp.mean(jnp.abs(y - y_ref)))
    assert max_err < 2e-1 and mean_err < 3e-2, (max_err, mean_err)

    print("KERNEL_OK")
</pallas_src>

<mosaic_0001>
module attributes {stable_mosaic.version = 11 : i64} {
  func.func @_downblock_kernel(%arg0: i32, %arg1: memref<1x4x64xf32, #tpu.memory_space<vmem>>, %arg2: memref<8x36xbf16, #tpu.memory_space<vmem>>, %arg3: memref<8x1xf32, #tpu.memory_space<vmem>>, %arg4: memref<8x72xbf16, #tpu.memory_space<vmem>>, %arg5: memref<8x1xf32, #tpu.memory_space<vmem>>, %arg6: memref<2x64xbf16, #tpu.memory_space<vmem>>, %arg7: memref<1x8x64xf32, #tpu.memory_space<vmem>>, %arg8: memref<4x82xbf16, #tpu.memory_space<vmem>>, %arg9: memref<8x82xbf16, #tpu.memory_space<vmem>>, %arg10: memref<36x64xbf16, #tpu.memory_space<vmem>>, %arg11: memref<72x64xbf16, #tpu.memory_space<vmem>>) attributes {dimension_semantics = [#tpu.dimension_semantics<parallel>], iteration_bounds = array<i64: 2>, scalar_prefetch = 0 : i64, scratch_operands = 4 : i64, tpu.core_type = #tpu.core_type<tc>, window_params = [{transform_indices = @transform_0, window_bounds = array<i64: 1, 4, 64>}, {pipeline_mode = #tpu.pipeline_mode<synchronous>, transform_indices = @transform_1, window_bounds = array<i64: 8, 36>}, {pipeline_mode = #tpu.pipeline_mode<synchronous>, transform_indices = @transform_2, window_bounds = array<i64: 8, 1>}, {pipeline_mode = #tpu.pipeline_mode<synchronous>, transform_indices = @transform_3, window_bounds = array<i64: 8, 72>}, {pipeline_mode = #tpu.pipeline_mode<synchronous>, transform_indices = @transform_4, window_bounds = array<i64: 8, 1>}, {pipeline_mode = #tpu.pipeline_mode<synchronous>, transform_indices = @transform_5, window_bounds = array<i64: 2, 64>}, {transform_indices = @transform_6, window_bounds = array<i64: 1, 8, 64>}]} {
    %c0 = arith.constant 0 : index
    %c0_0 = arith.constant 0 : index
    %0 = vector.load %arg6[%c0, %c0_0] : memref<2x64xbf16, #tpu.memory_space<vmem>>, vector<1x64xbf16>
    %c1 = arith.constant 1 : index
    %c0_1 = arith.constant 0 : index
    %1 = vector.load %arg6[%c1, %c0_1] : memref<2x64xbf16, #tpu.memory_space<vmem>>, vector<1x64xbf16>
    %c0_2 = arith.constant 0 : index
    %c0_3 = arith.constant 0 : index
    %c0_4 = arith.constant 0 : index
    %2 = vector.load %arg1[%c0_2, %c0_3, %c0_4] : memref<1x4x64xf32, #tpu.memory_space<vmem>>, vector<1x4x64xf32>
    %3 = vector.shape_cast %2 : vector<1x4x64xf32> to vector<4x64xf32>
    %4 = arith.truncf %3 : vector<4x64xf32> to vector<4x64xbf16>
    %cst = arith.constant 0.000000e+00 : bf16
    %5 = vector.broadcast %cst : bf16 to vector<4x9xbf16>
    %c0_5 = arith.constant 0 : index
    %c0_6 = arith.constant 0 : index
    %6 = vector.load %arg8[%c0_5, %c0_6] : memref<4x82xbf16, #tpu.memory_space<vmem>>, vector<4x9xbf16>
    tpu.vector_store %arg8[%c0_5, %c0_6], %5 {strides = array<i32>} : memref<4x82xbf16, #tpu.memory_space<vmem>>, vector<4x9xbf16>,
    %c0_7 = arith.constant 0 : index
    %c73 = arith.constant 73 : index
    %7 = vector.load %arg8[%c0_7, %c73] : memref<4x82xbf16, #tpu.memory_space<vmem>>, vector<4x9xbf16>
    tpu.vector_store %arg8[%c0_7, %c73], %5 {strides = array<i32>} : memref<4x82xbf16, #tpu.memory_space<vmem>>, vector<4x9xbf16>,
    %c0_8 = arith.constant 0 : index
    %c9 = arith.constant 9 : index
    %8 = vector.load %arg8[%c0_8, %c9] : memref<4x82xbf16, #tpu.memory_space<vmem>>, vector<4x64xbf16>
    tpu.vector_store %arg8[%c0_8, %c9], %4 {strides = array<i32>} : memref<4x82xbf16, #tpu.memory_space<vmem>>, vector<4x64xbf16>,
    %c0_9 = arith.constant 0 : index
    %c0_10 = arith.constant 0 : index
    %9 = vector.load %arg8[%c0_9, %c0_10] : memref<4x82xbf16, #tpu.memory_space<vmem>>, vector<4x64xbf16>
    %10 = vector.broadcast %0 : vector<1x64xbf16> to vector<4x64xbf16>
    %11 = arith.mulf %9, %10 : vector<4x64xbf16>
    %c0_11 = arith.constant 0 : index
    %c0_12 = arith.constant 0 : index
    %12 = vector.load %arg10[%c0_11, %c0_12] : memref<36x64xbf16, #tpu.memory_space<vmem>>, vector<4x64xbf16>
    tpu.vector_store %arg10[%c0_11, %c0_12], %11 {strides = array<i32>} : memref<36x64xbf16, #tpu.memory_space<vmem>>, vector<4x64xbf16>,
    %c0_13 = arith.constant 0 : index
    %c1_14 = arith.constant 1 : index
    %13 = vector.load %arg8[%c0_13, %c1_14] : memref<4x82xbf16, #tpu.memory_space<vmem>>, vector<4x64xbf16>
    %c4 = arith.constant 4 : index
    %c0_15 = arith.constant 0 : index
    %14 = vector.load %arg10[%c4, %c0_15] : memref<36x64xbf16, #tpu.memory_space<vmem>>, vector<4x64xbf16>
    tpu.vector_store %arg10[%c4, %c0_15], %13 {strides = array<i32>} : memref<36x64xbf16, #tpu.memory_space<vmem>>, vector<4x64xbf16>,
    %c0_16 = arith.constant 0 : index
    %c2 = arith.constant 2 : index
    %15 = vector.load %arg8[%c0_16, %c2] : memref<4x82xbf16, #tpu.memory_space<vmem>>, vector<4x64xbf16>
    %16 = vector.broadcast %1 : vector<1x64xbf16> to vector<4x64xbf16>
    %17 = arith.mulf %15, %16 : vector<4x64xbf16>
    %c8 = arith.constant 8 : index
    %c0_17 = arith.constant 0 : index
    %18 = vector.load %arg10[%c8, %c0_17] : memref<36x64xbf16, #tpu.memory_space<vmem>>, vector<4x64xbf16>
    tpu.vector_store %arg10[%c8, %c0_17], %17 {strides = array<i32>} : memref<36x64xbf16, #tpu.memory_space<vmem>>, vector<4x64xbf16>,
    %c0_18 = arith.constant 0 : index
    %c8_19 = arith.constant 8 : index
    %19 = vector.load %arg8[%c0_18, %c8_19] : memref<4x82xbf16, #tpu.memory_space<vmem>>, vector<4x64xbf16>
    %20 = vector.broadcast %0 : vector<1x64xbf16> to vector<4x64xbf16>
    %21 = arith.mulf %19, %20 : vector<4x64xbf16>
    %c12 = arith.constant 12 : index
    %c0_20 = arith.constant 0 : index
    %22 = vector.load %arg10[%c12, %c0_20] : memref<36x64xbf16, #tpu.memory_space<vmem>>, vector<4x64xbf16>
    tpu.vector_store %arg10[%c12, %c0_20], %21 {strides = array<i32>} : memref<36x64xbf16, #tpu.memory_space<vmem>>, vector<4x64xbf16>,
    %c0_21 = arith.constant 0 : index
    %c9_22 = arith.constant 9 : index
    %23 = vector.load %arg8[%c0_21, %c9_22] : memref<4x82xbf16, #tpu.memory_space<vmem>>, vector<4x64xbf16>
    %c16 = arith.constant 16 : index
    %c0_23 = arith.constant 0 : index
    %24 = vector.load %arg10[%c16, %c0_23] : memref<36x64xbf16, #tpu.memory_space<vmem>>, vector<4x64xbf16>
    tpu.vector_store %arg10[%c16, %c0_23], %23 {strides = array<i32>} : memref<36x64xbf16, #tpu.memory_space<vmem>>, vector<4x64xbf16>,
    %c0_24 = arith.constant 0 : index
    %c10 = arith.constant 10 : index
    %25 = vector.load %arg8[%c0_24, %c10] : memref<4x82xbf16, #tpu.memory_space<vmem>>, vector<4x64xbf16>
    %26 = vector.broadcast %1 : vector<1x64xbf16> to vector<4x64xbf16>
    %27 = arith.mulf %25, %26 : vector<4x64xbf16>
    %c20 = arith.constant 20 : index
    %c0_25 = arith.constant 0 : index
    %28 = vector.load %arg10[%c20, %c0_25] : memref<36x64xbf16, #tpu.memory_space<vmem>>, vector<4x64xbf16>
    tpu.vector_store %arg10[%c20, %c0_25], %27 {strides = array<i32>} : memref<36x64xbf16, #tpu.memory_space<vmem>>, vector<4x64xbf16>,
    %c0_26 = arith.constant 0 : index
    %c16_27 = arith.constant 16 : index
    %29 = vector.load %arg8[%c0_26, %c16_27] : memref<4x82xbf16, #tpu.memory_space<vmem>>, vector<4x64xbf16>
    %30 = vector.broadcast %0 : vector<1x64xbf16> to vector<4x64xbf16>
    %31 = arith.mulf %29, %30 : vector<4x64xbf16>
    %c24 = arith.constant 24 : index
    %c0_28 = arith.constant 0 : index
    %32 = vector.load %arg10[%c24, %c0_28] : memref<36x64xbf16, #tpu.memory_space<vmem>>, vector<4x64xbf16>
    tpu.vector_store %arg10[%c24, %c0_28], %31 {strides = array<i32>} : memref<36x64xbf16, #tpu.memory_space<vmem>>, vector<4x64xbf16>,
    %c0_29 = arith.constant 0 : index
    %c17 = arith.constant 17 : index
    %33 = vector.load %arg8[%c0_29, %c17] : memref<4x82xbf16, #tpu.memory_space<vmem>>, vector<4x64xbf16>
    %c28 = arith.constant 28 : index
    %c0_30 = arith.constant 0 : index
    %34 = vector.load %arg10[%c28, %c0_30] : memref<36x64xbf16, #tpu.memory_space<vmem>>, vector<4x64xbf16>
    tpu.vector_store %arg10[%c28, %c0_30], %33 {strides = array<i32>} : memref<36x64xbf16, #tpu.memory_space<vmem>>, vector<4x64xbf16>,
    %c0_31 = arith.constant 0 : index
    %c18 = arith.constant 18 : index
    %35 = vector.load %arg8[%c0_31, %c18] : memref<4x82xbf16, #tpu.memory_space<vmem>>, vector<4x64xbf16>
    %36 = vector.broadcast %1 : vector<1x64xbf16> to vector<4x64xbf16>
    %37 = arith.mulf %35, %36 : vector<4x64xbf16>
    %c32 = arith.constant 32 : index
    %c0_32 = arith.constant 0 : index
    %38 = vector.load %arg10[%c32, %c0_32] : memref<36x64xbf16, #tpu.memory_space<vmem>>, vector<4x64xbf16>
    tpu.vector_store %arg10[%c32, %c0_32], %37 {strides = array<i32>} : memref<36x64xbf16, #tpu.memory_space<vmem>>, vector<4x64xbf16>,
    %c0_33 = arith.constant 0 : index
    %c0_34 = arith.constant 0 : index
    %39 = vector.load %arg2[%c0_33, %c0_34] : memref<8x36xbf16, #tpu.memory_space<vmem>>, vector<8x36xbf16>
    %c0_35 = arith.constant 0 : index
    %c0_36 = arith.constant 0 : index
    %40 = vector.load %arg10[%c0_35, %c0_36] : memref<36x64xbf16, #tpu.memory_space<vmem>>, vector<36x64xbf16>
    %cst_37 = arith.constant dense<0.000000e+00> : vector<8x64xf32>
    %41 = tpu.matmul %39, %40, %cst_37 {dimension_numbers = #tpu.dot_dimension_numbers<[1], [0], [0], [1], [0, 0, 1, 1], [], []>} : vector<8x36xbf16>, vector<36x64xbf16>, vector<8x64xf32> -> vector<8x64xf32>
    %c0_38 = arith.constant 0 : index
    %c0_39 = arith.constant 0 : index
    %42 = vector.load %arg3[%c0_38, %c0_39] : memref<8x1xf32, #tpu.memory_space<vmem>>, vector<8x1xf32>
    %43 = vector.broadcast %42 : vector<8x1xf32> to vector<8x64xf32>
    %44 = arith.addf %41, %43 : vector<8x64xf32>
    %cst_40 = arith.constant 0.000000e+00 : f32
    %45 = vector.broadcast %cst_40 : f32 to vector<8x64xf32>
    %46 = arith.cmpf oge, %44, %45 : vector<8x64xf32>
    %cst_41 = arith.constant 0.00999999977 : f32
    %47 = vector.broadcast %cst_41 : f32 to vector<8x64xf32>
    %48 = arith.mulf %47, %44 : vector<8x64xf32>
    %49 = arith.select %46, %44, %48 : vector<8x64xi1>, vector<8x64xf32>
    %50 = arith.truncf %49 : vector<8x64xf32> to vector<8x64xbf16>
    %cst_42 = arith.constant 0.000000e+00 : bf16
    %51 = vector.broadcast %cst_42 : bf16 to vector<8x9xbf16>
    %c0_43 = arith.constant 0 : index
    %c0_44 = arith.constant 0 : index
    %52 = vector.load %arg9[%c0_43, %c0_44] : memref<8x82xbf16, #tpu.memory_space<vmem>>, vector<8x9xbf16>
    tpu.vector_store %arg9[%c0_43, %c0_44], %51 {strides = array<i32>} : memref<8x82xbf16, #tpu.memory_space<vmem>>, vector<8x9xbf16>,
    %c0_45 = arith.constant 0 : index
    %c73_46 = arith.constant 73 : index
    %53 = vector.load %arg9[%c0_45, %c73_46] : memref<8x82xbf16, #tpu.memory_space<vmem>>, vector<8x9xbf16>
    tpu.vector_store %arg9[%c0_45, %c73_46], %51 {strides = array<i32>} : memref<8x82xbf16, #tpu.memory_space<vmem>>, vector<8x9xbf16>,
    %c0_47 = arith.constant 0 : index
    %c9_48 = arith.constant 9 : index
    %54 = vector.load %arg9[%c0_47, %c9_48] : memref<8x82xbf16, #tpu.memory_space<vmem>>, vector<8x64xbf16>
    tpu.vector_store %arg9[%c0_47, %c9_48], %50 {strides = array<i32>} : memref<8x82xbf16, #tpu.memory_space<vmem>>, vector<8x64xbf16>,
    %c0_49 = arith.constant 0 : index
    %c0_50 = arith.constant 0 : index
    %55 = vector.load %arg9[%c0_49, %c0_50] : memref<8x82xbf16, #tpu.memory_space<vmem>>, vector<8x64xbf16>
    %56 = vector.broadcast %0 : vector<1x64xbf16> to vector<8x64xbf16>
    %57 = arith.mulf %55, %56 : vector<8x64xbf16>
    %c0_51 = arith.constant 0 : index
    %c0_52 = arith.constant 0 : index
    %58 = vector.load %arg11[%c0_51, %c0_52] : memref<72x64xbf16, #tpu.memory_space<vmem>>, vector<8x64xbf16>
    tpu.vector_store %arg11[%c0_51, %c0_52], %57 {strides = array<i32>} : memref<72x64xbf16, #tpu.memory_space<vmem>>, vector<8x64xbf16>,
    %c0_53 = arith.constant 0 : index
    %c1_54 = arith.constant 1 : index
    %59 = vector.load %arg9[%c0_53, %c1_54] : memref<8x82xbf16, #tpu.memory_space<vmem>>, vector<8x64xbf16>
    %c8_55 = arith.constant 8 : index
    %c0_56 = arith.constant 0 : index
    %60 = vector.load %arg11[%c8_55, %c0_56] : memref<72x64xbf16, #tpu.memory_space<vmem>>, vector<8x64xbf16>
    tpu.vector_store %arg11[%c8_55, %c0_56], %59 {strides = array<i32>} : memref<72x64xbf16, #tpu.memory_space<vmem>>, vector<8x64xbf16>,
    %c0_57 = arith.constant 0 : index
    %c2_58 = arith.constant 2 : index
    %61 = vector.load %arg9[%c0_57, %c2_58] : memref<8x82xbf16, #tpu.memory_space<vmem>>, vector<8x64xbf16>
    %62 = vector.broadcast %1 : vector<1x64xbf16> to vector<8x64xbf16>
    %63 = arith.mulf %61, %62 : vector<8x64xbf16>
    %c16_59 = arith.constant 16 : index
    %c0_60 = arith.constant 0 : index
    %64 = vector.load %arg11[%c16_59, %c0_60] : memref<72x64xbf16, #tpu.memory_space<vmem>>, vector<8x64xbf16>
    tpu.vector_store %arg11[%c16_59, %c0_60], %63 {strides = array<i32>} : memref<72x64xbf16, #tpu.memory_space<vmem>>, vector<8x64xbf16>,
    %c0_61 = arith.constant 0 : index
    %c8_62 = arith.constant 8 : index
    %65 = vector.load %arg9[%c0_61, %c8_62] : memref<8x82xbf16, #tpu.memory_space<vmem>>, vector<8x64xbf16>
    %66 = vector.broadcast %0 : vector<1x64xbf16> to vector<8x64xbf16>
    %67 = arith.mulf %65, %66 : vector<8x64xbf16>
    %c24_63 = arith.constant 24 : index
    %c0_64 = arith.constant 0 : index
    %68 = vector.load %arg11[%c24_63, %c0_64] : memref<72x64xbf16, #tpu.memory_space<vmem>>, vector<8x64xbf16>
    tpu.vector_store %arg11[%c24_63, %c0_64], %67 {strides = array<i32>} : memref<72x64xbf16, #tpu.memory_space<vmem>>, vector<8x64xbf16>,
    %c0_65 = arith.constant 0 : index
    %c9_66 = arith.constant 9 : index
    %69 = vector.load %arg9[%c0_65, %c9_66] : memref<8x82xbf16, #tpu.memory_space<vmem>>, vector<8x64xbf16>
    %c32_67 = arith.constant 32 : index
    %c0_68 = arith.constant 0 : index
    %70 = vector.load %arg11[%c32_67, %c0_68] : memref<72x64xbf16, #tpu.memory_space<vmem>>, vector<8x64xbf16>
    tpu.vector_store %arg11[%c32_67, %c0_68], %69 {strides = array<i32>} : memref<72x64xbf16, #tpu.memory_space<vmem>>, vector<8x64xbf16>,
    %c0_69 = arith.constant 0 : index
    %c10_70 = arith.constant 10 : index
    %71 = vector.load %arg9[%c0_69, %c10_70] : memref<8x82xbf16, #tpu.memory_space<vmem>>, vector<8x64xbf16>
    %72 = vector.broadcast %1 : vector<1x64xbf16> to vector<8x64xbf16>
    %73 = arith.mulf %71, %72 : vector<8x64xbf16>
    %c40 = arith.constant 40 : index
    %c0_71 = arith.constant 0 : index
    %74 = vector.load %arg11[%c40, %c0_71] : memref<72x64xbf16, #tpu.memory_space<vmem>>, vector<8x64xbf16>
    tpu.vector_store %arg11[%c40, %c0_71], %73 {strides = array<i32>} : memref<72x64xbf16, #tpu.memory_space<vmem>>, vector<8x64xbf16>,
    %c0_72 = arith.constant 0 : index
    %c16_73 = arith.constant 16 : index
    %75 = vector.load %arg9[%c0_72, %c16_73] : memref<8x82xbf16, #tpu.memory_space<vmem>>, vector<8x64xbf16>
    %76 = vector.broadcast %0 : vector<1x64xbf16> to vector<8x64xbf16>
    %77 = arith.mulf %75, %76 : vector<8x64xbf16>
    %c48 = arith.constant 48 : index
    %c0_74 = arith.constant 0 : index
    %78 = vector.load %arg11[%c48, %c0_74] : memref<72x64xbf16, #tpu.memory_space<vmem>>, vector<8x64xbf16>
    tpu.vector_store %arg11[%c48, %c0_74], %77 {strides = array<i32>} : memref<72x64xbf16, #tpu.memory_space<vmem>>, vector<8x64xbf16>,
    %c0_75 = arith.constant 0 : index
    %c17_76 = arith.constant 17 : index
    %79 = vector.load %arg9[%c0_75, %c17_76] : memref<8x82xbf16, #tpu.memory_space<vmem>>, vector<8x64xbf16>
    %c56 = arith.constant 56 : index
    %c0_77 = arith.constant 0 : index
    %80 = vector.load %arg11[%c56, %c0_77] : memref<72x64xbf16, #tpu.memory_space<vmem>>, vector<8x64xbf16>
    tpu.vector_store %arg11[%c56, %c0_77], %79 {strides = array<i32>} : memref<72x64xbf16, #tpu.memory_space<vmem>>, vector<8x64xbf16>,
    %c0_78 = arith.constant 0 : index
    %c18_79 = arith.constant 18 : index
    %81 = vector.load %arg9[%c0_78, %c18_79] : memref<8x82xbf16, #tpu.memory_space<vmem>>, vector<8x64xbf16>
    %82 = vector.broadcast %1 : vector<1x64xbf16> to vector<8x64xbf16>
    %83 = arith.mulf %81, %82 : vector<8x64xbf16>
    %c64 = arith.constant 64 : index
    %c0_80 = arith.constant 0 : index
    %84 = vector.load %arg11[%c64, %c0_80] : memref<72x64xbf16, #tpu.memory_space<vmem>>, vector<8x64xbf16>
    tpu.vector_store %arg11[%c64, %c0_80], %83 {strides = array<i32>} : memref<72x64xbf16, #tpu.memory_space<vmem>>, vector<8x64xbf16>,
    %c0_81 = arith.constant 0 : index
    %c0_82 = arith.constant 0 : index
    %85 = vector.load %arg4[%c0_81, %c0_82] : memref<8x72xbf16, #tpu.memory_space<vmem>>, vector<8x72xbf16>
    %c0_83 = arith.constant 0 : index
    %c0_84 = arith.constant 0 : index
    %86 = vector.load %arg11[%c0_83, %c0_84] : memref<72x64xbf16, #tpu.memory_space<vmem>>, vector<72x64xbf16>
    %cst_85 = arith.constant dense<0.000000e+00> : vector<8x64xf32>
    %87 = tpu.matmul %85, %86, %cst_85 {dimension_numbers = #tpu.dot_dimension_numbers<[1], [0], [0], [1], [0, 0, 1, 1], [], []>} : vector<8x72xbf16>, vector<72x64xbf16>, vector<8x64xf32> -> vector<8x64xf32>
    %c0_86 = arith.constant 0 : index
    %c0_87 = arith.constant 0 : index
    %88 = vector.load %arg5[%c0_86, %c0_87] : memref<8x1xf32, #tpu.memory_space<vmem>>, vector<8x1xf32>
    %89 = vector.broadcast %88 : vector<8x1xf32> to vector<8x64xf32>
    %90 = arith.addf %87, %89 : vector<8x64xf32>
    %cst_88 = arith.constant 0.000000e+00 : f32
    %91 = vector.broadcast %cst_88 : f32 to vector<8x64xf32>
    %92 = arith.cmpf oge, %90, %91 : vector<8x64xf32>
    %cst_89 = arith.constant 0.00999999977 : f32
    %93 = vector.broadcast %cst_89 : f32 to vector<8x64xf32>
    %94 = arith.mulf %93, %90 : vector<8x64xf32>
    %95 = arith.select %92, %90, %94 : vector<8x64xi1>, vector<8x64xf32>
    %c0_90 = arith.constant 0 : index
    %c0_91 = arith.constant 0 : index
    %c0_92 = arith.constant 0 : index
    %96 = vector.load %arg7[%c0_90, %c0_91, %c0_92] : memref<1x8x64xf32, #tpu.memory_space<vmem>>, vector<1x8x64xf32>
    %97 = vector.shape_cast %96 : vector<1x8x64xf32> to vector<8x64xf32>
    %98 = vector.shape_cast %95 : vector<8x64xf32> to vector<1x8x64xf32>
    tpu.vector_store %arg7[%c0_90, %c0_91, %c0_92], %98 {strides = array<i32>} : memref<1x8x64xf32, #tpu.memory_space<vmem>>, vector<1x8x64xf32>,
    return
  }
  func.func @transform_0(%arg0: i32) -> (i32, i32, i32) {
    %c0_i32 = arith.constant 0 : i32
    %c0_i32_0 = arith.constant 0 : i32
    %c0_i32_1 = arith.constant 0 : i32
    return %arg0, %c0_i32, %c0_i32_0 : i32, i32, i32
  }
  func.func @transform_1(%arg0: i32) -> (i32, i32) {
    %c0_i32 = arith.constant 0 : i32
    %c0_i32_0 = arith.constant 0 : i32
    %c0_i32_1 = arith.constant 0 : i32
    return %c0_i32, %c0_i32_0 : i32, i32
  }
  func.func @transform_2(%arg0: i32) -> (i32, i32) {
    %c0_i32 = arith.constant 0 : i32
    %c0_i32_0 = arith.constant 0 : i32
    %c0_i32_1 = arith.constant 0 : i32
    return %c0_i32, %c0_i32_0 : i32, i32
  }
  func.func @transform_3(%arg0: i32) -> (i32, i32) {
    %c0_i32 = arith.constant 0 : i32
    %c0_i32_0 = arith.constant 0 : i32
    %c0_i32_1 = arith.constant 0 : i32
    return %c0_i32, %c0_i32_0 : i32, i32
  }
  func.func @transform_4(%arg0: i32) -> (i32, i32) {
    %c0_i32 = arith.constant 0 : i32
    %c0_i32_0 = arith.constant 0 : i32
    %c0_i32_1 = arith.constant 0 : i32
    return %c0_i32, %c0_i32_0 : i32, i32
  }
  func.func @transform_5(%arg0: i32) -> (i32, i32) {
    %c0_i32 = arith.constant 0 : i32
    %c0_i32_0 = arith.constant 0 : i32
    %c0_i32_1 = arith.constant 0 : i32
    return %c0_i32, %c0_i32_0 : i32, i32
  }
  func.func @transform_6(%arg0: i32) -> (i32, i32, i32) {
    %c0_i32 = arith.constant 0 : i32
    %c0_i32_0 = arith.constant 0 : i32
    %c0_i32_1 = arith.constant 0 : i32
    return %arg0, %c0_i32, %c0_i32_0 : i32, i32, i32
  }
}

</mosaic_0001>

<llo_original>
// kernel: down_block_forward.1
$region0: #{down_block_forward.1}
  #allocation0 [shape = 'u32[]', space=smem, size = 0x4, offset = 0x4, fixed_abs, tag = 'smem constant byte address 0x4 - core index']
  #allocation1 [shape = 'u32[72,128]{1,0:T(1,128)}', space=vmem, size = 0x9000, scoped, tag = 'internal scratch']
  #allocation2 [shape = 'bf16[4,82]{1,0:T(4,128)(2,1)}', space=vmem, size = 0x400, scoped, tag = 'scratch operand']
  #allocation3 [shape = 'bf16[8,82]{1,0:T(8,128)(2,1)}', space=vmem, size = 0x800, scoped, tag = 'scratch operand']
  #allocation4 [shape = 'bf16[36,64]{1,0:T(8,128)(2,1)}', space=vmem, size = 0x2800, scoped, tag = 'scratch operand']
  #allocation5 [shape = 'bf16[72,64]{1,0:T(8,128)(2,1)}', space=vmem, size = 0x4800, scoped, tag = 'scratch operand']
  %s0 = inlined_call_operand.vmem [shape: f32[2,4,64], index: 0, kind: input, shape index: {}]
  %s1 = inlined_call_operand.vmem [shape: bf16[8,36], index: 1, kind: input, shape index: {}]
  %s2 = inlined_call_operand.vmem [shape: f32[8,1], index: 2, kind: input, shape index: {}]
  %s3 = inlined_call_operand.vmem [shape: bf16[8,72], index: 3, kind: input, shape index: {}]
  %s4 = inlined_call_operand.vmem [shape: f32[8,1], index: 4, kind: input, shape index: {}]
  %s5 = inlined_call_operand.vmem [shape: bf16[2,64], index: 5, kind: input, shape index: {}]
  %s6 = inlined_call_operand.vmem [shape: f32[2,8,64], index: 6, kind: output, shape index: {}]
  %s7 = sld [smem:[#allocation0]]
  $region57: #{down_block_forward.1} parent=0
    _
  %s9 = ssub.s32 1, %s7
  %s10 = scalar_select 0, %s9, %s7
  loop: start=0, step=1, limit=4
  $region2: #{down_block_forward.1} parent=0 // loop_pre_header
    _
  $region3: #{down_block_forward.1} parent=0 // loop_header
    %s12 = sphi 0, %s16
    %p13 = scmp.ge.s32.totalorder %s12, 4
    %s22 = sphi 0, %s24
    %s25 = sphi 0, %s22
    %s26 = sphi 0, %s25
    %s42 = sphi 0, %s26
    %s46 = sphi 0, %s46
    %s48 = sphi 0, %s46
    %s49 = sphi 0, %s48
    %s63 = sphi 0, %s49
    %s67 = sphi 0, %s67
    %s69 = sphi 0, %s67
    %s70 = sphi 0, %s69
    %s84 = sphi 0, %s70
    %s88 = sphi 0, %s88
    %s90 = sphi 0, %s88
    %s91 = sphi 0, %s90
    %s105 = sphi 0, %s91
    %s109 = sphi 0, %s109
    %s111 = sphi 0, %s109
    %s112 = sphi 0, %s111
    %s126 = sphi 0, %s112
    %s130 = sphi 0, %s130
    %s132 = sphi 0, %s130
    %s133 = sphi 0, %s132
    %s147 = sphi 0, %s133
    %s153 = sphi 0, %s155
    %s156 = sphi 0, %s153
    %s157 = sphi 0, %s156
    %s173 = sphi 0, %s157
  $region4: #{down_block_forward.1} parent=0 // loop_header_branch
    %15 = sbr.rel (%p13) target = $region8
  $region5: #{down_block_forward.1} parent=0 // loop_body
    %s17 = ssub.s32 %s12, 1
    %s18 = ssub.s32 %s12, 2
    %s19 = sadd.s32 %s12, 1
    %s20 = ssub.s32 %s12, %s19
    %p21 = scmp.eq.s32.totalorder %s20, 0
    %s23 = sadd.s32 %s22, 1
    %s24 = scalar_select %p21, %s22, %s23
    %p27 = pneg %p21
    %p28 = scmp.eq.s32.totalorder %s12, 1
    %p29 = por %p27, %p28
    %p30 = scmp.ne.s32.totalorder %s22, %s25
    %p31 = scmp.eq.s32.totalorder %s12, 0
    %p32 = por %p30, %p31
    %p33 = scmp.ne.s32.totalorder %s22, %s25
    %p34 = scmp.eq.s32.totalorder %s17, 1
    %p35 = por %p33, %p34
    %p36 = scmp.ne.s32.totalorder %s25, %s26
    %p37 = scmp.eq.s32.totalorder %s17, 0
    %p38 = por %p36, %p37
    %p39 = scmp.ne.s32.totalorder %s25, %s26
    %p40 = scmp.eq.s32.totalorder %s18, 1
    %p41 = por %p39, %p40
    %p43 = scmp.ne.s32.totalorder %s26, %s42
    %p44 = scmp.eq.s32.totalorder %s18, 0
    %p45 = por %p43, %p44
    %s47 = sadd.s32 %s46, 1
    %p50 = scmp.eq.s32.totalorder %s12, 1
    %p51 = scmp.ne.s32.totalorder %s46, %s48
    %p52 = scmp.eq.s32.totalorder %s12, 0
    %p53 = por %p51, %p52
    %p54 = scmp.ne.s32.totalorder %s46, %s48
    %p55 = scmp.eq.s32.totalorder %s17, 1
    %p56 = por %p54, %p55
    %p57 = scmp.ne.s32.totalorder %s48, %s49
    %p58 = scmp.eq.s32.totalorder %s17, 0
    %p59 = por %p57, %p58
    %p60 = scmp.ne.s32.totalorder %s48, %s49
    %p61 = scmp.eq.s32.totalorder %s18, 1
    %p62 = por %p60, %p61
    %p64 = scmp.ne.s32.totalorder %s49, %s63
    %p65 = scmp.eq.s32.totalorder %s18, 0
    %p66 = por %p64, %p65
    %s68 = sadd.s32 %s67, 1
    %p71 = scmp.eq.s32.totalorder %s12, 1
    %p72 = scmp.ne.s32.totalorder %s67, %s69
    %p73 = scmp.eq.s32.totalorder %s12, 0
    %p74 = por %p72, %p73
    %p75 = scmp.ne.s32.totalorder %s67, %s69
    %p76 = scmp.eq.s32.totalorder %s17, 1
    %p77 = por %p75, %p76
    %p78 = scmp.ne.s32.totalorder %s69, %s70
    %p79 = scmp.eq.s32.totalorder %s17, 0
    %p80 = por %p78, %p79
    %p81 = scmp.ne.s32.totalorder %s69, %s70
    %p82 = scmp.eq.s32.totalorder %s18, 1
    %p83 = por %p81, %p82
    %p85 = scmp.ne.s32.totalorder %s70, %s84
    %p86 = scmp.eq.s32.totalorder %s18, 0
    %p87 = por %p85, %p86
    %s89 = sadd.s32 %s88, 1
    %p92 = scmp.eq.s32.totalorder %s12, 1
    %p93 = scmp.ne.s32.totalorder %s88, %s90
    %p94 = scmp.eq.s32.totalorder %s12, 0
    %p95 = por %p93, %p94
    %p96 = scmp.ne.s32.totalorder %s88, %s90
    %p97 = scmp.eq.s32.totalorder %s17, 1
    %p98 = por %p96, %p97
    %p99 = scmp.ne.s32.totalorder %s90, %s91
    %p100 = scmp.eq.s32.totalorder %s17, 0
    %p101 = por %p99, %p100
    %p102 = scmp.ne.s32.totalorder %s90, %s91
    %p103 = scmp.eq.s32.totalorder %s18, 1
    %p104 = por %p102, %p103
    %p106 = scmp.ne.s32.totalorder %s91, %s105
    %p107 = scmp.eq.s32.totalorder %s18, 0
    %p108 = por %p106, %p107
    %s110 = sadd.s32 %s109, 1
    %p113 = scmp.eq.s32.totalorder %s12, 1
    %p114 = scmp.ne.s32.totalorder %s109, %s111
    %p115 = scmp.eq.s32.totalorder %s12, 0
    %p116 = por %p114, %p115
    %p117 = scmp.ne.s32.totalorder %s109, %s111
    %p118 = scmp.eq.s32.totalorder %s17, 1
    %p119 = por %p117, %p118
    %p120 = scmp.ne.s32.totalorder %s111, %s112
    %p121 = scmp.eq.s32.totalorder %s17, 0
    %p122 = por %p120, %p121
    %p123 = scmp.ne.s32.totalorder %s111, %s112
    %p124 = scmp.eq.s32.totalorder %s18, 1
    %p125 = por %p123, %p124
    %p127 = scmp.ne.s32.totalorder %s112, %s126
    %p128 = scmp.eq.s32.totalorder %s18, 0
    %p129 = por %p127, %p128
    %s131 = sadd.s32 %s130, 1
    %p134 = scmp.eq.s32.totalorder %s12, 1
    %p135 = scmp.ne.s32.totalorder %s130, %s132
    %p136 = scmp.eq.s32.totalorder %s12, 0
    %p137 = por %p135, %p136
    %p138 = scmp.ne.s32.totalorder %s130, %s132
    %p139 = scmp.eq.s32.totalorder %s17, 1
    %p140 = por %p138, %p139
    %p141 = scmp.ne.s32.totalorder %s132, %s133
    %p142 = scmp.eq.s32.totalorder %s17, 0
    %p143 = por %p141, %p142
    %p144 = scmp.ne.s32.totalorder %s132, %s133
    %p145 = scmp.eq.s32.totalorder %s18, 1
    %p146 = por %p144, %p145
    %p148 = scmp.ne.s32.totalorder %s133, %s147
    %p149 = scmp.eq.s32.totalorder %s18, 0
    %p150 = por %p148, %p149
    %s151 = ssub.s32 %s12, %s19
    %p152 = scmp.eq.s32.totalorder %s151, 0
    %s154 = sadd.s32 %s153, 1
    %s155 = scalar_select %p152, %s153, %s154
    %p158 = pneg %p152
    %p159 = scmp.eq.s32.totalorder %s12, 1
    %p160 = por %p158, %p159
    %p161 = scmp.ne.s32.totalorder %s153, %s156
    %p162 = scmp.eq.s32.totalorder %s12, 0
    %p163 = por %p161, %p162
    %p164 = scmp.ne.s32.totalorder %s153, %s156
    %p165 = scmp.eq.s32.totalorder %s17, 1
    %p166 = por %p164, %p165
    %p167 = scmp.ne.s32.totalorder %s156, %s157
    %p168 = scmp.eq.s32.totalorder %s17, 0
    %p169 = por %p167, %p168
    %p170 = scmp.ne.s32.totalorder %s156, %s157
    %p171 = scmp.eq.s32.totalorder %s18, 1
    %p172 = por %p170, %p171
    %p174 = scmp.ne.s32.totalorder %s157, %s173
    %p175 = scmp.eq.s32.totalorder %s18, 0
    %p176 = por %p174, %p175
    %p177 = scmp.le.s32.totalorder 1, %s12
    %p178 = scmp.lt.s32.totalorder %s12, 3
    %p179 = pnand %p177, %p178
    %p180 = pneg %p179
    // Predicated region
    $region9: #{down_block_forward.1} parent=5 // pred_check
      _
    $region10: #{down_block_forward.1} parent=5 // pred_check_branch
      %182 = sbr.rel (%p179) target = $region12
    $region11: #{down_block_forward.1} parent=5 // pred_region
      %s183 = ssub.s32 %s12, 1
      // Predicated region
      $region13: #{down_block_forward.1} parent=11 // pred_check
        %p184 = pneg %p59
      $region14: #{down_block_forward.1} parent=11 // pred_check_branch
        %186 = sbr.rel (%p184) target = $region16
      $region15: #{down_block_forward.1} parent=11 // pred_region
        _
      $region16: #{down_block_forward.1} parent=11 // pred_fallthru
        _
      // Predicated region
      $region17: #{down_block_forward.1} parent=11 // pred_check
        %p187 = pneg %p80
      $region18: #{down_block_forward.1} parent=11 // pred_check_branch
        %189 = sbr.rel (%p187) target = $region20
      $region19: #{down_block_forward.1} parent=11 // pred_region
        _
      $region20: #{down_block_forward.1} parent=11 // pred_fallthru
        _
      // Predicated region
      $region21: #{down_block_forward.1} parent=11 // pred_check
        %p190 = pneg %p101
      $region22: #{down_block_forward.1} parent=11 // pred_check_branch
        %192 = sbr.rel (%p190) target = $region24
      $region23: #{down_block_forward.1} parent=11 // pred_region
        _
      $region24: #{down_block_forward.1} parent=11 // pred_fallthru
        _
      // Predicated region
      $region25: #{down_block_forward.1} parent=11 // pred_check
        %p193 = pneg %p122
      $region26: #{down_block_forward.1} parent=11 // pred_check_branch
        %195 = sbr.rel (%p193) target = $region28
      $region27: #{down_block_forward.1} parent=11 // pred_region
        _
      $region28: #{down_block_forward.1} parent=11 // pred_fallthru
        _
      // Predicated region
      $region29: #{down_block_forward.1} parent=11 // pred_check
        %p196 = pneg %p143
      $region30: #{down_block_forward.1} parent=11 // pred_check_branch
        %198 = sbr.rel (%p196) target = $region32
      $region31: #{down_block_forward.1} parent=11 // pred_region
        _
      $region32: #{down_block_forward.1} parent=11 // pred_fallthru
        _
    $region12: #{down_block_forward.1} parent=5 // pred_fallthru
      _
    %p199 = scmp.lt.s32.totalorder %s12, 2
    // Predicated region
    $region33: #{down_block_forward.1} parent=5 // pred_check
      %p200 = pneg %p199
    $region34: #{down_block_forward.1} parent=5 // pred_check_branch
      %202 = sbr.rel (%p200) target = $region36
    $region35: #{down_block_forward.1} parent=5 // pred_region
      // Predicated region
      $region37: #{down_block_forward.1} parent=35 // pred_check
        %p203 = pneg %p32
      $region38: #{down_block_forward.1} parent=35 // pred_check_branch
        %205 = sbr.rel (%p203) target = $region40
      $region39: #{down_block_forward.1} parent=35 // pred_region
        %p206 = scmp.lt.s32.totalorder %s12, 1
        %s207 = scalar_select %p206, %s12, 1
        %s208 = smul.addr %s207, 4
        %s209 = scalar_lea.vmem %s0, %s208
      $region40: #{down_block_forward.1} parent=35 // pred_fallthru
        _
    $region36: #{down_block_forward.1} parent=5 // pred_fallthru
      _
    %p210 = scmp.le.s32.totalorder 1, %s12
    %p211 = scmp.lt.s32.totalorder %s12, 3
    %p212 = pnand %p210, %p211
    %p213 = pneg %p212
    // Predicated region
    $region41: #{down_block_forward.1} parent=5 // pred_check
      _
    $region42: #{down_block_forward.1} parent=5 // pred_check_branch
      %215 = sbr.rel (%p212) target = $region44
    $region43: #{down_block_forward.1} parent=5 // pred_region
      %s216 = ssub.s32 %s12, 1
      %p217 = scmp.lt.s32.totalorder %s17, 1
      %s218 = scalar_select %p217, %s17, 1
      %s219 = smul.addr %s218, 4
      %s220 = scalar_lea.vmem %s0, %s219
      %p221 = pneg %p38
      %p222 = pneg %p35
      %p223 = pneg %p59
      %p224 = pneg %p56
      %p225 = pneg %p80
      %p226 = pneg %p77
      %p227 = pneg %p101
      %p228 = pneg %p98
      %p229 = pneg %p122
      %p230 = pneg %p119
      %p231 = pneg %p143
      %p232 = pneg %p140
      %p233 = pneg %p169
      %p234 = pneg %p166
      %p235 = scmp.lt.s32.totalorder %s17, 1
      %s236 = scalar_select %p235, %s17, 1
      %s237 = smul.addr %s236, 8
      %s238 = scalar_lea.vmem %s6, %s237
      %p239 = scmp.lt.s32.totalorder %s17, 1
      %s240 = scalar_select %p239, %s17, 1
      %s241 = smul.addr %s240, 4
      %s242 = scalar_lea.vmem %s0, %s241
      %p243 = scmp.lt.s32.totalorder %s17, 1
      %s244 = scalar_select %p243, %s17, 1
      %s245 = smul.addr %s244, 8
      %s246 = scalar_lea.vmem %s6, %s245
      %v248 = vld [vmem:[%s5] sm:$0x1]
      %v249 = vld [vmem:[%s242] sm:$0xf]
      %v250 = vpack.c.bf16 %v249, %v249
      %vm251 = vcmask 66560
      %252 = vst.msk [vmem:[#allocation2] sm:$0x3] %vm251, 0
      %vm253 = vcmask 665160
      %254 = vst.msk [vmem:[#allocation2] sm:$0x3] %vm253, 0
      %v256 = vrot.slane %v250, 2
      %vm257 = vcmask 1041408
      %v260 = vsel %vm257, %v250, %v256
      %262 = vrot.lane.b32.xlu0 %v260, 9
      %v263 = vpop.permute.xlu0 %262
      %vm265 = vcmask 590920
      %266 = vst.msk [vmem:[#allocation2] sm:$0x3] %vm265, %v263
      %v267 = vld [vmem:[#allocation2] sm:$0x3]
      %v269 = vpack.i.b16 %v248, %v248
      %v271 = vperm.slane %v269, 0
      %v272 = vunpack.c.l.bf16 %v267
      %v273 = vunpack.c.l.bf16 %v271
      %v274 = vmul.f32 %v272, %v273
      %v275 = vpack.c.bf16 %v274, %v274
      %vm276 = vcmask 517120
      %277 = vst.msk [vmem:[#allocation4] sm:$0x3] %vm276, %v275
      %v278 = vld [vmem:[#allocation2] sm:$0x3]
      %s280 = scalar_lea.vmem [#allocation1], 1
      %281 = vst [vmem:[%s280] ss:$2 sm:$0xff] %v278
      %v282 = vld.sshfl [vmem:[#allocation1] sm:$0xff pattern:$0x75643120]
      %284 = vrot.lane.b32.xlu0 %v282, 127
      %v285 = vpop.permute.xlu0 %284
      %vm287 = vcmask 519170
      %288 = vst.msk [vmem:[#allocation4] sm:$0xc] %vm287, %v285
      %v289 = vld [vmem:[#allocation2] sm:$0x3]
      %v290 = vshrl.u32 %v248, 16
      %v291 = vpack.i.b16 %v290, %v290
      %v293 = vperm.slane %v291, 0
      %v294 = vunpack.c.l.bf16 %v289
      %v295 = vunpack.c.l.bf16 %v293
      %297 = vrot.lane.b32.xlu0 %v295, 2
      %v298 = vpop.permute.xlu0 %297
      %v300 = vmul.f32 %v294, %v298
      %v301 = vpack.c.bf16 %v300, %v300
      %303 = vrot.lane.b32.xlu0 %v301, 126
      %v304 = vpop.permute.xlu0 %303
      %306 = vst.msk [vmem:[#allocation4 + $0x4] sm:$0x3] %vm276, %v304
      %v307 = vld [vmem:[#allocation2] sm:$0x3]
      %v308 = vunpack.c.l.bf16 %v307
      %310 = vrot.lane.b32.xlu0 %v273, 8
      %v311 = vpop.permute.xlu0 %310
      %v313 = vmul.f32 %v308, %v311
      %v314 = vpack.c.bf16 %v313, %v313
      %v316 = vrot.slane %v314, 6
      %317 = vrot.lane.b32.xlu0 %v316, 120
      %v318 = vpop.permute.xlu0 %317
      %320 = vst.msk [vmem:[#allocation4 + $0x4] sm:$0xc] %vm287, %v318
      %v321 = vld [vmem:[#allocation2] sm:$0x3]
      %323 = vst [vmem:[#allocation1] ss:$2 sm:$0xff] %v321
      %v324 = vld.sshfl [vmem:[#allocation1] sm:$0xff pattern:$0x75643120]
      %326 = vrot.lane.b32.xlu0 %v324, 119
      %v327 = vpop.permute.xlu0 %326
      %329 = vst.msk [vmem:[#allocation4 + $0x8] sm:$0x3] %vm276, %v327
      %v330 = vld [vmem:[#allocation2] sm:$0x3]
      %v331 = vunpack.c.l.bf16 %v330
      %332 = vrot.lane.b32.xlu0 %v295, 10
      %v333 = vpop.permute.xlu0 %332
      %v335 = vmul.f32 %v331, %v333
      %v336 = vpack.c.bf16 %v335, %v335
      %v338 = vrot.slane %v336, 6
      %339 = vrot.lane.b32.xlu0 %v338, 118
      %v340 = vpop.permute.xlu0 %339
      %342 = vst.msk [vmem:[#allocation4 + $0x8] sm:$0xc] %vm287, %v340
      %v343 = vld [vmem:[#allocation2] sm:$0x3]
      %v344 = vunpack.c.l.bf16 %v343
      %345 = vrot.lane.b32.xlu0 %v273, 16
      %v346 = vpop.permute.xlu0 %345
      %v348 = vmul.f32 %v344, %v346
      %v349 = vpack.c.bf16 %v348, %v348
      %351 = vrot.lane.b32.xlu0 %v349, 112
      %v352 = vpop.permute.xlu0 %351
      %354 = vst.msk [vmem:[#allocation4 + $0xc] sm:$0x3] %vm276, %v352
      %v355 = vld [vmem:[#allocation2] sm:$0x3]
      %s357 = scalar_lea.vmem [#allocation1], 1
      %358 = vst [vmem:[%s357] ss:$2 sm:$0xff] %v355
      %v359 = vld.sshfl [vmem:[#allocation1] sm:$0xff pattern:$0x75643120]
      %361 = vrot.lane.b32.xlu0 %v359, 111
      %v362 = vpop.permute.xlu0 %361
      %364 = vst.msk [vmem:[#allocation4 + $0xc] sm:$0xc] %vm287, %v362
      %v365 = vld [vmem:[#allocation2] sm:$0x3]
      %v366 = vunpack.c.l.bf16 %v365
      %367 = vrot.lane.b32.xlu0 %v295, 18
      %v368 = vpop.permute.xlu0 %367
      %v370 = vmul.f32 %v366, %v368
      %v371 = vpack.c.bf16 %v370, %v370
      %373 = vrot.lane.b32.xlu0 %v371, 110
      %v374 = vpop.permute.xlu0 %373
      %376 = vst.msk [vmem:[#allocation4 + $0x10] sm:$0x3] %vm276, %v374
      %v377 = vld [vmem:[%s1] sm:$0xf]
      %v378 = vld [vmem:[#allocation4] sm:$0xf]
      %v379 = vld [vmem:[#allocation4 + $0x4] sm:$0xf]
      %v380 = vld [vmem:[#allocation4 + $0x8] sm:$0xf]
      %v381 = vld [vmem:[#allocation4 + $0xc] sm:$0xf]
      %v382 = vld [vmem:[#allocation4 + $0x10] sm:$0x3]
      %v383 = vld [vmem:[%s2] sm:$0xff]
      %385 = vset.pattern.permute.xlu0 0
      %386 = vperm.xlu0 %385, %v383
      %v387 = vpop.permute.xlu0 %386
      %v394 = vunpack.c.l.b16 %v378
      %v395 = vunpack.c.l.b16 %v379
      %v396 = vunpack.c.l.b16 %v380
      %v397 = vunpack.c.l.b16 %v381
      %v398 = vunpack.c.l.b16 %v382
      %v399 = vpack.c.b16 %v395, %v394
      %v400 = vpack.c.b16 %v397, %v396
      %v401 = vpack.c.b16 %v398, %v398
      %vm404 = vcmask 293888
      %v406 = vsel %vm404, %v377, 0
      %v409 = vsel %vm257, %v401, 0
      %411 = vmatpush.bf16.msra.mxu0 0
      %412 = vmatpush.bf16.msra.mxu0 0
      %413 = vmatpush.bf16.msra.mxu0 0
      %414 = vmatpush.bf16.msra.mxu0 0
      %415 = vmatpush.bf16.msra.mxu0 0
      %416 = vmatpush.bf16.msra.mxu0 %v409
      %417 = vmatpush.bf16.msra.mxu0 %v400
      %418 = vmatpush.bf16.msra.mxu0 %v399
      %419 = vmatmul.bf16.gmra.mxu0 %v406
      %v420 = vpop.f32.mrf.mxu0
      %v421 = vadd.f32 %v387, %v420
      %v422 = vpop.f32.mrf.mxu0
      %423 = vdwg.mxu0
      %vm424 = vcmp.ge.f32.partialorder %v421, 0.0
      %v425 = vmul.f32 %v421, 0.01
      %v426 = vsel %vm424, %v421, %v425
      %v427 = vpack.c.bf16 %v426, %v426
      %vm428 = vcmask 68608
      %429 = vst.msk [vmem:[#allocation3] sm:$0xf] %vm428, 0
      %vm430 = vcmask 667208
      %431 = vst.msk [vmem:[#allocation3] sm:$0xf] %vm430, 0
      %433 = vrot.lane.b32.xlu0 %v427, 9
      %v434 = vpop.permute.xlu0 %433
      %vm436 = vcmask 592968
      %437 = vst.msk [vmem:[#allocation3] sm:$0xf] %vm436, %v434
      %v438 = vld [vmem:[#allocation3] sm:$0xf]
      %v439 = vunpack.c.l.bf16 %v438
      %v440 = vmul.f32 %v439, %v273
      %v441 = vpack.c.bf16 %v440, %v440
      %vm442 = vcmask 519168
      %443 = vst.msk [vmem:[#allocation5] sm:$0xf] %vm442, %v441
      %v444 = vld [vmem:[#allocation3] sm:$0xf]
      %446 = vrot.lane.b32.xlu0 %v444, 127
      %v447 = vpop.permute.xlu0 %446
      %449 = vst.msk [vmem:[#allocation5 + $0x4] sm:$0xf] %vm442, %v447
      %v450 = vld [vmem:[#allocation3] sm:$0xf]
      %v451 = vunpack.c.l.bf16 %v450
      %v452 = vmul.f32 %v451, %v298
      %v453 = vpack.c.bf16 %v452, %v452
      %455 = vrot.lane.b32.xlu0 %v453, 126
      %v456 = vpop.permute.xlu0 %455
      %458 = vst.msk [vmem:[#allocation5 + $0x8] sm:$0xf] %vm442, %v456
      %v459 = vld [vmem:[#allocation3] sm:$0xf]
      %v460 = vunpack.c.l.bf16 %v459
      %v461 = vmul.f32 %v460, %v311
      %v462 = vpack.c.bf16 %v461, %v461
      %464 = vrot.lane.b32.xlu0 %v462, 120
      %v465 = vpop.permute.xlu0 %464
      %467 = vst.msk [vmem:[#allocation5 + $0xc] sm:$0xf] %vm442, %v465
      %v468 = vld [vmem:[#allocation3] sm:$0xf]
      %470 = vrot.lane.b32.xlu0 %v468, 119
      %v471 = vpop.permute.xlu0 %470
      %473 = vst.msk [vmem:[#allocation5 + $0x10] sm:$0xf] %vm442, %v471
      %v474 = vld [vmem:[#allocation3] sm:$0xf]
      %v475 = vunpack.c.l.bf16 %v474
      %v476 = vmul.f32 %v475, %v333
      %v477 = vpack.c.bf16 %v476, %v476
      %479 = vrot.lane.b32.xlu0 %v477, 118
      %v480 = vpop.permute.xlu0 %479
      %482 = vst.msk [vmem:[#allocation5 + $0x14] sm:$0xf] %vm442, %v480
      %v483 = vld [vmem:[#allocation3] sm:$0xf]
      %v484 = vunpack.c.l.bf16 %v483
      %v485 = vmul.f32 %v484, %v346
      %v486 = vpack.c.bf16 %v485, %v485
      %488 = vrot.lane.b32.xlu0 %v486, 112
      %v489 = vpop.permute.xlu0 %488
      %491 = vst.msk [vmem:[#allocation5 + $0x18] sm:$0xf] %vm442, %v489
      %v492 = vld [vmem:[#allocation3] sm:$0xf]
      %494 = vrot.lane.b32.xlu0 %v492, 111
      %v495 = vpop.permute.xlu0 %494
      %497 = vst.msk [vmem:[#allocation5 + $0x1c] sm:$0xf] %vm442, %v495
      %v498 = vld [vmem:[#allocation3] sm:$0xf]
      %v499 = vunpack.c.l.bf16 %v498
      %v500 = vmul.f32 %v499, %v368
      %v501 = vpack.c.bf16 %v500, %v500
      %503 = vrot.lane.b32.xlu0 %v501, 110
      %v504 = vpop.permute.xlu0 %503
      %506 = vst.msk [vmem:[#allocation5 + $0x20] sm:$0xf] %vm442, %v504
      %v507 = vld [vmem:[%s3] sm:$0xf]
      %v508 = vld [vmem:[#allocation5] sm:$0xf]
      %v509 = vld [vmem:[#allocation5 + $0x4] sm:$0xf]
      %v510 = vld [vmem:[#allocation5 + $0x8] sm:$0xf]
      %v511 = vld [vmem:[#allocation5 + $0xc] sm:$0xf]
      %v512 = vld [vmem:[#allocation5 + $0x10] sm:$0xf]
      %v513 = vld [vmem:[#allocation5 + $0x14] sm:$0xf]
      %v514 = vld [vmem:[#allocation5 + $0x18] sm:$0xf]
      %v515 = vld [vmem:[#allocation5 + $0x1c] sm:$0xf]
      %v516 = vld [vmem:[#allocation5 + $0x20] sm:$0xf]
      %v517 = vld [vmem:[%s4] sm:$0xff]
      %519 = vset.pattern.permute.xlu0 0
      %520 = vperm.xlu0 %519, %v517
      %v521 = vpop.permute.xlu0 %520
      %v532 = vunpack.c.l.b16 %v508
      %v533 = vunpack.c.l.b16 %v509
      %v534 = vunpack.c.l.b16 %v510
      %v535 = vunpack.c.l.b16 %v511
      %v536 = vunpack.c.l.b16 %v512
      %v537 = vunpack.c.l.b16 %v513
      %v538 = vunpack.c.l.b16 %v514
      %v539 = vunpack.c.l.b16 %v515
      %v540 = vunpack.c.l.b16 %v516
      %v541 = vpack.c.b16 %v533, %v532
      %v542 = vpack.c.b16 %v535, %v534
      %v543 = vpack.c.b16 %v537, %v536
      %v544 = vpack.c.b16 %v539, %v538
      %v545 = vpack.c.b16 %v540, %v540
      %vm550 = vcmask 588800
      %v552 = vsel %vm550, %v507, 0
      %vm554 = vcmask 1043456
      %v556 = vsel %vm554, %v545, 0
      %558 = vmatpush.bf16.msra.mxu0 0
      %559 = vmatpush.bf16.msra.mxu0 0
      %560 = vmatpush.bf16.msra.mxu0 0
      %561 = vmatpush.bf16.msra.mxu0 %v556
      %562 = vmatpush.bf16.msra.mxu0 %v544
      %563 = vmatpush.bf16.msra.mxu0 %v543
      %564 = vmatpush.bf16.msra.mxu0 %v542
      %565 = vmatpush.bf16.msra.mxu0 %v541
      %566 = vmatmul.bf16.gmra.mxu0 %v552
      %v567 = vpop.f32.mrf.mxu0
      %v568 = vadd.f32 %v521, %v567
      %v569 = vpop.f32.mrf.mxu0
      %570 = vdwg.mxu0
      %vm571 = vcmp.ge.f32.partialorder %v568, 0.0
      %v572 = vmul.f32 %v568, 0.01
      %v573 = vsel %vm571, %v568, %v572
      %vm574 = vcmask 523264
      %575 = vst.msk [vmem:[%s246] sm:$0xff] %vm574, %v573
      %p576 = scmp.lt.s32.totalorder %s17, 1
      %s577 = scalar_select %p576, %s17, 1
      %s578 = smul.addr %s577, 8
      %s579 = scalar_lea.vmem %s6, %s578
      // Predicated region
      $region45: #{down_block_forward.1} parent=43 // pred_check
        %p580 = pneg %p166
      $region46: #{down_block_forward.1} parent=43 // pred_check_branch
        %582 = sbr.rel (%p580) target = $region48
      $region47: #{down_block_forward.1} parent=43 // pred_region
        _
      $region48: #{down_block_forward.1} parent=43 // pred_fallthru
        _
    $region44: #{down_block_forward.1} parent=5 // pred_fallthru
      _
    %p583 = scmp.le.s32.totalorder 2, %s12
    // Predicated region
    $region49: #{down_block_forward.1} parent=5 // pred_check
      %p584 = pneg %p583
    $region50: #{down_block_forward.1} parent=5 // pred_check_branch
      %586 = sbr.rel (%p584) target = $region52
    $region51: #{down_block_forward.1} parent=5 // pred_region
      %s587 = ssub.s32 %s12, 2
      // Predicated region
      $region53: #{down_block_forward.1} parent=51 // pred_check
        %p588 = pneg %p172
      $region54: #{down_block_forward.1} parent=51 // pred_check_branch
        %590 = sbr.rel (%p588) target = $region56
      $region55: #{down_block_forward.1} parent=51 // pred_region
        %p591 = scmp.lt.s32.totalorder %s18, 1
        %s592 = scalar_select %p591, %s18, 1
        %s593 = smul.addr %s592, 8
        %s594 = scalar_lea.vmem %s6, %s593
      $region56: #{down_block_forward.1} parent=51 // pred_fallthru
        _
    $region52: #{down_block_forward.1} parent=5 // pred_fallthru
      _
  $region6: #{down_block_forward.1} parent=0 // loop_footer
    %s16 = sadd.s32 1, %s12
  $region7: #{down_block_forward.1} parent=0 // loop_footer_branch
    %11 = sbr.rel target = $region3
  $region8: #{down_block_forward.1} parent=0 // loop_exit
    _

</llo_original>
